<compile_context>
chip_gen: v5e
topology: v5e:2x2
jax: 0.10.0
libtpu: 0.0.40
codegen_flags: <defaults>
</compile_context>

<pallas_src>
import functools

import jax
import jax.numpy as jnp
from jax import lax
from jax.experimental import pallas as pl
from jax.experimental.pallas import tpu as pltpu


def _ce_partial_kernel(x_ref, t_ref, out_ref, acc_ref, *, total_n, tile_m,
                       steps_per_core):
    c = pl.program_id(0)      # row-shard index (parallel across TensorCores)
    i = pl.program_id(1)      # sequential step within the shard (reduction axis)

    @pl.when(i == 0)
    def _():
        acc_ref[...] = jnp.zeros_like(acc_ref)

    x = x_ref[...]                          # (tile_m, C) logits, input dtype
    t = t_ref[...]                          # (tile_m, 1) int32 targets

    # Unclamped global row offset of this tile -> mask for the ragged tail and
    # for fully-out-of-range (overrun) tiles on the last shard.
    row0 = (c * steps_per_core + i) * tile_m
    rows = row0 + lax.broadcasted_iota(jnp.int32, (tile_m, 1), 0)
    valid = rows < total_n                                   # (tile_m, 1) bool

    # Fused single pass over the tile:
    #   s = x - m (f32) is reused by both exp(s) and the target pick; the +/- m
    #   cancels in per-row CE = log(sum(exp(s))) - s[target].
    m = jnp.max(x, axis=-1, keepdims=True).astype(jnp.float32)   # (tile_m, 1)
    s = x.astype(jnp.float32) - m                                # (tile_m, C)

    cls = lax.broadcasted_iota(jnp.int32, (1, x.shape[1]), 1)    # (1, C) row iota
    tgt_s = jnp.sum(jnp.where(cls == t, s, 0.0), axis=-1, keepdims=True)
    sum_e = jnp.sum(jnp.exp(s), axis=-1, keepdims=True)

    per_row_ce = jnp.where(valid, jnp.log(sum_e) - tgt_s, 0.0)   # (tile_m, 1)

    # Collapse to a scalar per step (XLU reduce) and accumulate into a tiny
    # (1, 1) VMEM accumulator instead of a lane-sparse (tile_m, 1) RMW.
    acc_ref[...] += jnp.sum(per_row_ce, keepdims=True).reshape(1, 1)

    @pl.when(i == pl.num_programs(1) - 1)
    def _():
        partial = jnp.sum(acc_ref[...])                      # (1,1) -> scalar
        out_ref[...] = jnp.zeros(out_ref.shape, jnp.float32) + partial


def _detect_tpu():
    """Return (vmem_capacity_bytes, num_tensorcores_usable_by_parallel_axis)."""
    vmem_cap = 128 * 1024 * 1024
    try:
        vmem_cap = int(pltpu.get_tpu_info().vmem_capacity_bytes)
    except Exception:
        pass
    kind = ""
    try:
        kind = jax.devices()[0].device_kind.lower()
    except Exception:
        pass
    # v5e / v6e: 1 TensorCore per chip; v7x (2 TCs) and v4/v5p megacore: 2.
    if ("v7" in kind) or ("7x" in kind) or ("v4" in kind) or ("v5p" in kind):
        num_cores = 2
    else:
        num_cores = 1
    return vmem_cap, num_cores


def focal_loss(logits, targets, *, gamma=0.0, eps=1e-7, num_cores=None,
               tile_m=None):
    """logits: (N, C) float (f32 or bf16); targets: (N,) int. Returns scalar f32.

    NOTE: `eps` is kept only for API parity with the PyTorch module, which
    accepts it in __init__ but never uses it in forward().
    """
    N, C = logits.shape
    t2d = targets.astype(jnp.int32).reshape(N, 1)

    vmem_cap, detected_cores = _detect_tpu()
    if num_cores is None:
        num_cores = detected_cores

    # Generation-aware VMEM budgets: 128-MiB chips (v5e/v6e) get a larger tile
    # budget; 64-MiB v7x keeps the in-kernel working set conservative.
    if vmem_cap >= 96 * 1024 * 1024:
        tile_budget = 32 * 1024 * 1024
        vmem_limit = 64 * 1024 * 1024
    else:
        tile_budget = 20 * 1024 * 1024
        vmem_limit = 32 * 1024 * 1024

    # Pad rows to a sublane multiple of 8 only if needed (masked out in-kernel).
    n_pad = ((N + 7) // 8) * 8
    if n_pad != N:
        logits = jnp.pad(logits, ((0, n_pad - N), (0, 0)))
        t2d = jnp.pad(t2d, ((0, n_pad - N), (0, 0)))

    itemsize = jnp.dtype(logits.dtype).itemsize
    if tile_m is None:
        # Footprint/row (lane-padded): double-buffered logits DMA tile in its
        # input dtype + ~4 f32 in-kernel temporaries.
        lanes = ((C + 127) // 128) * 128
        bytes_per_row = 2 * itemsize * lanes + 16 * lanes
        cap = tile_budget // bytes_per_row
        cap = max(8, min(4096, (cap // 8) * 8))
        tile_m = min(cap, n_pad)
    tile_m = max(8, (int(tile_m) // 8) * 8)

    total_blocks = -(-n_pad // tile_m)
    num_cores = max(1, min(int(num_cores), total_blocks))
    steps_per_core = -(-total_blocks // num_cores)
    last_block = total_blocks - 1

    def x_map(c, i):
        return (jnp.minimum(c * steps_per_core + i, last_block), 0)

    def t_map(c, i):
        return (jnp.minimum(c * steps_per_core + i, last_block), 0)

    kernel = functools.partial(
        _ce_partial_kernel,
        total_n=int(N), tile_m=int(tile_m), steps_per_core=int(steps_per_core),
    )

    cost = pl.CostEstimate(
        flops=6 * N * C,
        transcendentals=N * C,
        bytes_accessed=itemsize * N * C + 4 * N + 4 * num_cores * 8 * 128,
    )

    partials = pl.pallas_call(
        kernel,
        out_shape=jax.ShapeDtypeStruct((num_cores, 8, 128), jnp.float32),
        grid_spec=pltpu.PrefetchScalarGridSpec(
            num_scalar_prefetch=0,
            grid=(num_cores, steps_per_core),
            in_specs=[
                pl.BlockSpec((tile_m, C), x_map),
                pl.BlockSpec((tile_m, 1), t_map),
            ],
            out_specs=pl.BlockSpec((1, 8, 128), lambda c, i: (c, 0, 0)),
            scratch_shapes=[pltpu.VMEM((1, 1), jnp.float32)],
        ),
        compiler_params=pltpu.CompilerParams(
            dimension_semantics=("parallel", "arbitrary"),
            vmem_limit_bytes=int(vmem_limit),
        ),
        cost_estimate=cost,
    )(logits, t2d)

    # Tiny scalar epilogue (mean CE -> focal transform) in plain JAX on the
    # per-core partials, so the parallel axis never shares an accumulator.
    logp = jnp.sum(partials[:, 0, 0]) / jnp.float32(N)
    p = jnp.exp(-logp)
    return (1.0 - p) ** jnp.float32(gamma) * logp


def focal_loss_ref(logits, targets, gamma=0.0):
    """Pure-JAX reference mirroring the PyTorch module."""
    x = logits.astype(jnp.float32)
    lse = jax.nn.logsumexp(x, axis=-1)
    tgt = jnp.take_along_axis(x, targets[:, None].astype(jnp.int32), axis=-1)[:, 0]
    logp = jnp.mean(lse - tgt)          # CrossEntropyLoss (mean reduction, no weight)
    p = jnp.exp(-logp)
    return (1.0 - p) ** gamma * logp


if __name__ == "__main__":
    key = jax.random.PRNGKey(0)
    k1, k2, k3, k4 = jax.random.split(key, 4)

    # Case 1: (N, C) logits + class-index targets, gamma=2 exercises the focal factor.
    N1, C1, gamma1 = 16, 32, 2.0
    logits1 = jax.random.normal(k1, (N1, C1), dtype=jnp.float32)
    targets1 = jax.random.randint(k2, (N1,), 0, C1, dtype=jnp.int32)
    out1 = jax.block_until_ready(focal_loss(logits1, targets1, gamma=gamma1))
    ref1 = focal_loss_ref(logits1, targets1, gamma=gamma1)
    assert jnp.allclose(out1, ref1, rtol=1e-5, atol=1e-5), (out1, ref1)

    # Case 2: ragged N (not a multiple of 8) + module-default gamma=0, exercising
    # the in-kernel row mask / overrun-tile clamp path.
    N2, C2, gamma2 = 13, 10, 0.0
    logits2 = jax.random.normal(k3, (N2, C2), dtype=jnp.float32)
    targets2 = jax.random.randint(k4, (N2,), 0, C2, dtype=jnp.int32)
    out2 = jax.block_until_ready(focal_loss(logits2, targets2, gamma=gamma2))
    ref2 = focal_loss_ref(logits2, targets2, gamma=gamma2)
    assert jnp.allclose(out2, ref2, rtol=1e-5, atol=1e-5), (out2, ref2)

    print("KERNEL_OK")
</pallas_src>

<mosaic_0001>
module attributes {stable_mosaic.version = 11 : i64} {
  func.func @_ce_partial_kernel(%arg0: i32, %arg1: i32, %arg2: memref<16x32xf32, #tpu.memory_space<vmem>>, %arg3: memref<16x1xi32, #tpu.memory_space<vmem>>, %arg4: memref<1x8x128xf32, #tpu.memory_space<vmem>>, %arg5: memref<1x1xf32, #tpu.memory_space<vmem>>) attributes {dimension_semantics = [#tpu.dimension_semantics<parallel>, #tpu.dimension_semantics<arbitrary>], iteration_bounds = array<i64: 1, 1>, scalar_prefetch = 0 : i64, scratch_operands = 1 : i64, tpu.core_type = #tpu.core_type<tc>, window_params = [{transform_indices = @transform_0, window_bounds = array<i64: 16, 32>}, {transform_indices = @transform_1, window_bounds = array<i64: 16, 1>}, {transform_indices = @transform_2, window_bounds = array<i64: 1, 8, 128>}]} {
    %c0_i32 = arith.constant 0 : i32
    %0 = arith.cmpi eq, %arg1, %c0_i32 : i32
    %1 = arith.extui %0 : i1 to i32
    %c0_i32_0 = arith.constant 0 : i32
    %2 = arith.cmpi ne, %1, %c0_i32_0 : i32
    scf.if %2 {
      %cst_16 = arith.constant 0.000000e+00 : f32
      %43 = vector.broadcast %cst_16 : f32 to vector<1x1xf32>
      %c0_17 = arith.constant 0 : index
      %c0_18 = arith.constant 0 : index
      %44 = vector.load %arg5[%c0_17, %c0_18] : memref<1x1xf32, #tpu.memory_space<vmem>>, vector<1x1xf32>
      tpu.vector_store %arg5[%c0_17, %c0_18], %43 {strides = array<i32>} : memref<1x1xf32, #tpu.memory_space<vmem>>, vector<1x1xf32>,
    } else {
    }
    %c0 = arith.constant 0 : index
    %c0_1 = arith.constant 0 : index
    %3 = vector.load %arg2[%c0, %c0_1] : memref<16x32xf32, #tpu.memory_space<vmem>>, vector<16x32xf32>
    %c0_2 = arith.constant 0 : index
    %c0_3 = arith.constant 0 : index
    %4 = vector.load %arg3[%c0_2, %c0_3] : memref<16x1xi32, #tpu.memory_space<vmem>>, vector<16x1xi32>
    %c1_i32 = arith.constant 1 : i32
    %5 = arith.muli %arg0, %c1_i32 : i32
    %6 = arith.addi %5, %arg1 : i32
    %c16_i32 = arith.constant 16 : i32
    %7 = arith.muli %6, %c16_i32 : i32
    %8 = tpu.iota {dimensions = array<i32: 0>} : vector<16x1xi32>
    %9 = vector.broadcast %7 : i32 to vector<16x1xi32>
    %10 = arith.addi %9, %8 : vector<16x1xi32>
    %c16_i32_4 = arith.constant 16 : i32
    %11 = vector.broadcast %c16_i32_4 : i32 to vector<16x1xi32>
    %12 = arith.cmpi slt, %10, %11 : vector<16x1xi32>
    %cst = arith.constant dense<0xFF800000> : vector<16xf32>
    %13 = vector.multi_reduction <maximumf>, %3, %cst [1] : vector<16x32xf32> to vector<16xf32>
    %14 = vector.shape_cast %13 : vector<16xf32> to vector<16x1xf32>
    %15 = vector.broadcast %14 : vector<16x1xf32> to vector<16x32xf32>
    %16 = arith.subf %3, %15 : vector<16x32xf32>
    %17 = tpu.iota {dimensions = array<i32: 1>} : vector<1x32xi32>
    %18 = vector.broadcast %17 : vector<1x32xi32> to vector<16x32xi32>
    %19 = vector.broadcast %4 : vector<16x1xi32> to vector<16x32xi32>
    %20 = arith.cmpi eq, %18, %19 : vector<16x32xi32>
    %cst_5 = arith.constant 0.000000e+00 : f32
    %21 = vector.broadcast %cst_5 : f32 to vector<16x32xf32>
    %22 = arith.select %20, %16, %21 : vector<16x32xi1>, vector<16x32xf32>
    %cst_6 = arith.constant dense<0.000000e+00> : vector<16xf32>
    %23 = vector.multi_reduction <add>, %22, %cst_6 [1] : vector<16x32xf32> to vector<16xf32>
    %24 = vector.shape_cast %23 : vector<16xf32> to vector<16x1xf32>
    %25 = math.exp %16 : vector<16x32xf32>
    %cst_7 = arith.constant dense<0.000000e+00> : vector<16xf32>
    %26 = vector.multi_reduction <add>, %25, %cst_7 [1] : vector<16x32xf32> to vector<16xf32>
    %27 = vector.shape_cast %26 : vector<16xf32> to vector<16x1xf32>
    %28 = math.log %27 : vector<16x1xf32>
    %29 = arith.subf %28, %24 : vector<16x1xf32>
    %cst_8 = arith.constant 0.000000e+00 : f32
    %30 = vector.broadcast %cst_8 : f32 to vector<16x1xf32>
    %31 = arith.select %12, %29, %30 : vector<16x1xi1>, vector<16x1xf32>
    %c0_9 = arith.constant 0 : index
    %c0_10 = arith.constant 0 : index
    %32 = vector.load %arg5[%c0_9, %c0_10] : memref<1x1xf32, #tpu.memory_space<vmem>>, vector<1x1xf32>
    %33 = vector.shape_cast %31 : vector<16x1xf32> to vector<1x16x1xf32>
    %cst_11 = arith.constant dense<0.000000e+00> : vector<1xf32>
    %34 = vector.multi_reduction <add>, %33, %cst_11 [1, 2] : vector<1x16x1xf32> to vector<1xf32>
    %35 = vector.shape_cast %34 : vector<1xf32> to vector<1x1x1xf32>
    %36 = vector.extract %35[0, 0, 0] : f32 from vector<1x1x1xf32>
    %37 = vector.broadcast %36 : f32 to vector<1x1xf32>
    %38 = arith.addf %32, %37 : vector<1x1xf32>
    %c0_12 = arith.constant 0 : index
    %c0_13 = arith.constant 0 : index
    %39 = vector.load %arg5[%c0_12, %c0_13] : memref<1x1xf32, #tpu.memory_space<vmem>>, vector<1x1xf32>
    tpu.vector_store %arg5[%c0_12, %c0_13], %38 {strides = array<i32>} : memref<1x1xf32, #tpu.memory_space<vmem>>, vector<1x1xf32>,
    %c0_i32_14 = arith.constant 0 : i32
    %40 = arith.cmpi eq, %arg1, %c0_i32_14 : i32
    %41 = arith.extui %40 : i1 to i32
    %c0_i32_15 = arith.constant 0 : i32
    %42 = arith.cmpi ne, %41, %c0_i32_15 : i32
    scf.if %42 {
      %c0_16 = arith.constant 0 : index
      %c0_17 = arith.constant 0 : index
      %43 = vector.load %arg5[%c0_16, %c0_17] : memref<1x1xf32, #tpu.memory_space<vmem>>, vector<1x1xf32>
      %44 = vector.shape_cast %43 : vector<1x1xf32> to vector<1x1x1xf32>
      %cst_18 = arith.constant dense<0.000000e+00> : vector<1xf32>
      %45 = vector.multi_reduction <add>, %44, %cst_18 [1, 2] : vector<1x1x1xf32> to vector<1xf32>
      %46 = vector.shape_cast %45 : vector<1xf32> to vector<1x1x1xf32>
      %47 = vector.extract %46[0, 0, 0] : f32 from vector<1x1x1xf32>
      %cst_19 = arith.constant 0.000000e+00 : f32
      %48 = vector.broadcast %cst_19 : f32 to vector<1x8x128xf32>
      %49 = vector.broadcast %47 : f32 to vector<1x8x128xf32>
      %50 = arith.addf %48, %49 : vector<1x8x128xf32>
      %c0_20 = arith.constant 0 : index
      %c0_21 = arith.constant 0 : index
      %c0_22 = arith.constant 0 : index
      %51 = vector.load %arg4[%c0_20, %c0_21, %c0_22] : memref<1x8x128xf32, #tpu.memory_space<vmem>>, vector<1x8x128xf32>
      tpu.vector_store %arg4[%c0_20, %c0_21, %c0_22], %50 {strides = array<i32>} : memref<1x8x128xf32, #tpu.memory_space<vmem>>, vector<1x8x128xf32>,
    } else {
    }
    return
  }
  func.func @transform_0(%arg0: i32, %arg1: i32) -> (i32, i32) {
    %c1_i32 = arith.constant 1 : i32
    %0 = arith.muli %arg0, %c1_i32 : i32
    %1 = arith.addi %0, %arg1 : i32
    %c0_i32 = arith.constant 0 : i32
    %2 = arith.minsi %1, %c0_i32 : i32
    %c0_i32_0 = arith.constant 0 : i32
    %c0_i32_1 = arith.constant 0 : i32
    return %2, %c0_i32_0 : i32, i32
  }
  func.func @transform_1(%arg0: i32, %arg1: i32) -> (i32, i32) {
    %c1_i32 = arith.constant 1 : i32
    %0 = arith.muli %arg0, %c1_i32 : i32
    %1 = arith.addi %0, %arg1 : i32
    %c0_i32 = arith.constant 0 : i32
    %2 = arith.minsi %1, %c0_i32 : i32
    %c0_i32_0 = arith.constant 0 : i32
    %c0_i32_1 = arith.constant 0 : i32
    return %2, %c0_i32_0 : i32, i32
  }
  func.func @transform_2(%arg0: i32, %arg1: i32) -> (i32, i32, i32) {
    %c0_i32 = arith.constant 0 : i32
    %c0_i32_0 = arith.constant 0 : i32
    %c0_i32_1 = arith.constant 0 : i32
    return %arg0, %c0_i32, %c0_i32_0 : i32, i32, i32
  }
}

</mosaic_0001>

<llo_original>
// kernel: tpu_custom_call.1
$region0: #{tpu_custom_call.1}
  #allocation0 [shape = 'u32[]', space=smem, size = 0x4, offset = 0x4, fixed_abs, tag = 'smem constant byte address 0x4 - core index']
  #allocation1 [shape = 'u32[72,128]{1,0:T(1,128)}', space=vmem, size = 0x9000, scoped, tag = 'internal scratch']
  #allocation2 [shape = 'f32[1,1]{1,0:T(1,128)}', space=vmem, size = 0x200, scoped, tag = 'scratch operand']
  %s0 = inlined_call_operand.vmem [shape: f32[16,32], index: 0, kind: input, shape index: {}]
  %s1 = inlined_call_operand.vmem [shape: s32[16,1], index: 1, kind: input, shape index: {}]
  %s2 = inlined_call_operand.hbm [shape: f32[1,8,128], index: 2, kind: output, shape index: {}]
  %s3 = sld [smem:[#allocation0]]
  $region26: #{tpu_custom_call.1} parent=0
    _
  %s5 = ssub.s32 1, %s3
  %s6 = scalar_select 0, %s5, %s3
  $region1: #{tpu_custom_call.1} parent=0
    #allocation3 [shape = 'u8[4096]{0}', space=vmem, size = 0x1000, scoped, tag = 'output window, operand 0, single buffered']
    #allocation4 [shape = 's32[1]{0}', space=sflag, size = 0x4, scoped, tag = 'scoped memory for tpu_custom_call.1']
    %7 = vsyncpa [#allocation4], 0
    // Predicated region
    $region2: #{tpu_custom_call.1} parent=1 // pred_check
      _
    $region3: #{tpu_custom_call.1} parent=1 // pred_check_branch
      %9 = sbr.rel (0) target = $region5
    $region4: #{tpu_custom_call.1} parent=1 // pred_region
      %s10 = sadd.s32 0, 0
      %p11 = scmp.lt.s32.totalorder %s10, 0
      %s12 = scalar_select %p11, %s10, 0
      %s13 = smul.u32 2, %s12
      %p14 = scmp.lt.s32.totalorder %s13, 1
      %s15 = scalar_select %p14, %s13, 1
      %s16 = smul.addr %s15, 8
      %s17 = scalar_lea.vmem %s0, %s16
      %s18 = sadd.s32 0, 0
      %p19 = scmp.lt.s32.totalorder %s18, 0
      %s20 = scalar_select %p19, %s18, 0
      %s21 = smul.u32 2, %s20
    $region5: #{tpu_custom_call.1} parent=1 // pred_fallthru
      _
    // Predicated region
    $region6: #{tpu_custom_call.1} parent=1 // pred_check
      _
    $region7: #{tpu_custom_call.1} parent=1 // pred_check_branch
      %23 = sbr.rel (0) target = $region9
    $region8: #{tpu_custom_call.1} parent=1 // pred_region
      %s24 = sadd.s32 0, 0
      %p25 = scmp.lt.s32.totalorder %s24, 0
      %s26 = scalar_select %p25, %s24, 0
      %s27 = smul.u32 2, %s26
      %p28 = scmp.lt.s32.totalorder %s27, 1
      %s29 = scalar_select %p28, %s27, 1
      %s30 = smul.addr %s29, 8
      %s31 = scalar_lea.vmem %s1, %s30
      %s32 = sadd.s32 0, 0
      %p33 = scmp.lt.s32.totalorder %s32, 0
      %s34 = scalar_select %p33, %s32, 0
      %s35 = smul.u32 2, %s34
    $region9: #{tpu_custom_call.1} parent=1 // pred_fallthru
      _
    %s36 = sadd.s32 0, 0
    %p37 = scmp.lt.s32.totalorder %s36, 0
    %s38 = scalar_select %p37, %s36, 0
    %s39 = smul.u32 2, %s38
    %p40 = scmp.lt.s32.totalorder %s39, 1
    %s41 = scalar_select %p40, %s39, 1
    %s42 = smul.addr %s41, 8
    %s43 = scalar_lea.vmem %s0, %s42
    %s44 = sadd.s32 0, 0
    %p45 = scmp.lt.s32.totalorder %s44, 0
    %s46 = scalar_select %p45, %s44, 0
    %s47 = smul.u32 2, %s46
    %p48 = scmp.lt.s32.totalorder %s47, 1
    %s49 = scalar_select %p48, %s47, 1
    %s50 = smul.addr %s49, 8
    %s51 = scalar_lea.vmem %s1, %s50
    %s52 = sadd.s32 0, 0
    %p53 = scmp.lt.s32.totalorder %s52, 0
    %s54 = scalar_select %p53, %s52, 0
    %s55 = smul.u32 2, %s54
    %p56 = scmp.lt.s32.totalorder %s55, 1
    %s57 = scalar_select %p56, %s55, 1
    %s58 = smul.addr %s57, 8
    %s59 = scalar_lea.vmem %s0, %s58
    %s60 = sadd.s32 0, 0
    %p61 = scmp.lt.s32.totalorder %s60, 0
    %s62 = scalar_select %p61, %s60, 0
    %s63 = smul.u32 2, %s62
    %s64 = sadd.s32 0, 0
    %p65 = scmp.lt.s32.totalorder %s64, 0
    %s66 = scalar_select %p65, %s64, 0
    %s67 = smul.u32 2, %s66
    %p68 = scmp.lt.s32.totalorder %s67, 1
    %s69 = scalar_select %p68, %s67, 1
    %s70 = smul.addr %s69, 8
    %s71 = scalar_lea.vmem %s1, %s70
    %s72 = sadd.s32 0, 0
    %p73 = scmp.lt.s32.totalorder %s72, 0
    %s74 = scalar_select %p73, %s72, 0
    %s75 = smul.u32 2, %s74
    %p76 = scmp.eq.s32.totalorder 0, 0
    // Predicated region
    $region10: #{tpu_custom_call.1} parent=1 // pred_check
      %p77 = pneg %p76
    $region11: #{tpu_custom_call.1} parent=1 // pred_check_branch
      %79 = sbr.rel (%p77) target = $region13
    $region12: #{tpu_custom_call.1} parent=1 // pred_region
      %vm80 = vcmask 0
      %81 = vst.msk [vmem:[#allocation2] sm:$0x1] %vm80, 0.0
    $region13: #{tpu_custom_call.1} parent=1 // pred_fallthru
      _
    %v82 = vld [vmem:[%s59] sm:$0xff]
    %v83 = vld [vmem:[%s59 + $0x8] sm:$0xff]
    %v84 = vld [vmem:[%s71] sm:$0xff]
    %v85 = vld [vmem:[%s71 + $0x8] sm:$0xff]
    %s86 = sadd.s32 0, 0
    %s87 = smul.u32 %s86, 16
    %v88 = vlaneseq
    %v89 = vshrl.u32 %v88, 7
    %v90 = vadd.s32 %v89, 8
    %v91 = vstv %s87
    %v92 = vadd.s32 %v91, %v89
    %v93 = vadd.s32 %v91, %v90
    %vm94 = vcmp.lt.s32.totalorder %v92, 16
    %vm95 = vcmp.lt.s32.totalorder %v93, 16
    %vm96 = vcmask 261120
    %v97 = vsel %vm96, %v82, -inf
    %98 = vmax.xlane.f32.xlu0 %v97
    %v99 = vpop.xlane.xlu0 %98
    %v100 = vsel %vm96, %v83, -inf
    %101 = vmax.xlane.f32.xlu0 %v100
    %v102 = vpop.xlane.xlu0 %101
    %v103 = vsub.f32 %v82, %v99
    %v104 = vsub.f32 %v83, %v102
    %v105 = vlaneseq
    %v106 = vand.u32 %v105, 127
    %107 = vset.pattern.permute.xlu0 0
    %108 = vperm.xlu0 %107, %v84
    %v109 = vpop.permute.xlu0 %108
    %110 = vset.pattern.permute.xlu0 0
    %111 = vperm.xlu0 %110, %v85
    %v112 = vpop.permute.xlu0 %111
    %vm113 = vcmp.eq.s32.totalorder %v106, %v109
    %vm114 = vcmp.eq.s32.totalorder %v106, %v112
    %v115 = vsel %vm113, %v103, 0.0
    %v116 = vsel %vm114, %v104, 0.0
    %v117 = vsel %vm96, %v115, 0.0
    %118 = vadd.xlane.f32.xlu0 %v117
    %v119 = vpop.xlane.xlu0 %118
    %v120 = vsel %vm96, %v116, 0.0
    %121 = vadd.xlane.f32.xlu0 %v120
    %v122 = vpop.xlane.xlu0 %121
    %v123 = vmul.f32 %v103, 1.442695
    %v124 = vpow.pop %v123
    %v125 = vmul.f32 %v104, 1.442695
    %v126 = vpow.pop %v125
    %v127 = vsel %vm96, %v124, 0.0
    %128 = vadd.xlane.f32.xlu0 %v127
    %v129 = vpop.xlane.xlu0 %128
    %v130 = vsel %vm96, %v126, 0.0
    %131 = vadd.xlane.f32.xlu0 %v130
    %v132 = vpop.xlane.xlu0 %131
    %v133 = vlog2.pop %v129
    %v134 = vmul.f32 %v133, 0.6931472
    %v135 = vlog2.pop %v132
    %v136 = vmul.f32 %v135, 0.6931472
    %v137 = vsub.f32 %v134, %v119
    %v138 = vsub.f32 %v136, %v122
    %v139 = vsel %vm94, %v137, 0.0
    %v140 = vsel %vm95, %v138, 0.0
    %v141 = vld [vmem:[#allocation2] sm:$0x1]
    %vm142 = vcmask 7168
    %v143 = vsel %vm142, %v139, 0.0
    %v144 = vsel %vm142, %v140, 0.0
    %v145 = vadd.f32 %v143, %v144
    %146 = vadd.xlane.f32.xlu0 %v145
    %v147 = vpop.xlane.xlu0 %146
    %v148 = vrot.slane %v147, 4
    %v149 = vadd.f32 %v147, %v148
    %v150 = vrot.slane %v149, 2
    %v151 = vadd.f32 %v149, %v150
    %v152 = vrot.slane %v151, 1
    %v153 = vadd.f32 %v151, %v152
    %s154 = vtos %v153
    %v155 = vstv %s154
    %v156 = vadd.f32 %v141, %v155
    %vm157 = vcmask 0
    %158 = vst.msk [vmem:[#allocation2] sm:$0x1] %vm157, %v156
    // Predicated region
    $region14: #{tpu_custom_call.1} parent=1 // pred_check
      %p159 = pneg %p76
    $region15: #{tpu_custom_call.1} parent=1 // pred_check_branch
      %161 = sbr.rel (%p159) target = $region17
    $region16: #{tpu_custom_call.1} parent=1 // pred_region
      %v162 = vld [vmem:[#allocation2] sm:$0x1]
      %v163 = vadd.f32 %v162, 0.0
      %s164 = vtos %v163
      %v165 = vstv %s164
      %v166 = vadd.f32 %v165, 0.0
      %167 = vst [vmem:[#allocation3] sm:$0xff] %v166
    $region17: #{tpu_custom_call.1} parent=1 // pred_fallthru
      _
    // Predicated region
    $region18: #{tpu_custom_call.1} parent=1 // pred_check
      _
    $region19: #{tpu_custom_call.1} parent=1 // pred_check_branch
      %169 = sbr.rel (0) target = $region21
    $region20: #{tpu_custom_call.1} parent=1 // pred_region
      %171 = vsyncadd [#allocation4], 0
      %s173 = sshll.u32 [#allocation3], 4
      %s174 = int_to_ptr.vmem [resolvable:$true] %s173
      %s175 = sshll.u32 %s2, 4
      %s176 = int_to_ptr.hbm [resolvable:$true] %s175
      %178 = dma.vmem_to_hbm [thread:$0]  %s174, 128, %s176, [#allocation4]
    $region21: #{tpu_custom_call.1} parent=1 // pred_fallthru
      _
    // Predicated region
    $region22: #{tpu_custom_call.1} parent=1 // pred_check
      _
    $region23: #{tpu_custom_call.1} parent=1 // pred_check_branch
      %180 = sbr.rel (0) target = $region25
    $region24: #{tpu_custom_call.1} parent=1 // pred_region
      %182 = dma.done [#allocation4], 128
    $region25: #{tpu_custom_call.1} parent=1 // pred_fallthru
      _
    %183 = vsyncpa [#allocation4], 1

</llo_original>
